<compile_context>
chip_gen: v5e
topology: v5e:2x2
jax: 0.10.0
libtpu: 0.0.40
codegen_flags: <defaults>
</compile_context>

<pallas_src>
import functools

import jax
import jax.numpy as jnp
from jax import lax
from jax.experimental import pallas as pl
from jax.experimental.pallas import tpu as pltpu


H_PAD = 128  # hidden width padded to the 128-lane vreg width


# ---------------------------------------------------------------- kernel ----

def _vmem_spec():
    return pl.BlockSpec(memory_space=pltpu.MemorySpace.VMEM)


def gin_fused_kernel(nlayer,
                     a_ref, x0_ref,
                     wpre_ref, bpre_ref,
                     w1_ref, b1_ref, w2_ref, b2_ref,
                     p_ref, wpost_ref, bpost_ref, wread_ref, bread_ref,
                     o_ref,
                     x_scr):
    # ---- pre: Linear(nfeat -> nhid) ---------------------------------------
    x_scr[...] = (
        jnp.dot(x0_ref[...], wpre_ref[...], preferred_element_type=jnp.float32)
        + bpre_ref[...]
    )

    # ---- GINConv layers; activations stay resident in VMEM scratch --------
    def layer_body(l, carry):
        x = x_scr[...]
        # A_hat already contains the (1 + eps) * I self term (eps = 0).
        # Stored bf16 (exact small-int edge counts); cast back to f32 so the
        # aggregation is bit-exact w.r.t. the f32 reference.
        a = a_ref[...].astype(jnp.float32)
        agg = jnp.dot(a, x, preferred_element_type=jnp.float32)
        # MLP: Linear -> ReLU -> Linear
        h = jnp.dot(agg, w1_ref[l], preferred_element_type=jnp.float32) + b1_ref[l]
        h = jnp.maximum(h, 0.0)
        h = jnp.dot(h, w2_ref[l], preferred_element_type=jnp.float32) + b2_ref[l]
        # outer F.relu applied after each conv in GIN.forward
        x_scr[...] = jnp.maximum(h, 0.0)
        # TODO(synk): F.dropout is identity in eval mode; training-mode dropout
        # (pltpu.prng_*) not implemented.
        return carry

    lax.fori_loop(0, nlayer, layer_body, 0, unroll=True)

    # ---- head: global_add_pool -> post (Linear+ReLU) -> readout -> log_softmax
    g = jnp.dot(p_ref[...], x_scr[...], preferred_element_type=jnp.float32)
    h = jnp.dot(g, wpost_ref[...], preferred_element_type=jnp.float32) + bpost_ref[...]
    h = jnp.maximum(h, 0.0)
    logits = (
        jnp.dot(h, wread_ref[...], preferred_element_type=jnp.float32) + bread_ref[...]
    )
    m = jnp.max(logits, axis=1, keepdims=True)
    z = logits - m
    lse = jnp.log(jnp.sum(jnp.exp(z), axis=1, keepdims=True))
    o_ref[...] = z - lse


# ------------------------------------------------------------- GIN module ---

def init_linear(key, fan_in, fan_out, pad_in=None, pad_out=None):
    """PyTorch-style uniform(-1/sqrt(fan_in), ...) init, W as (in, out).

    Zero-pads to (pad_in, pad_out); padded rows/cols are zero so the padded
    network is exactly equivalent to the unpadded one.
    """
    kw, kb = jax.random.split(key)
    bound = 1.0 / float(fan_in) ** 0.5
    w = jax.random.uniform(kw, (fan_in, fan_out), jnp.float32, -bound, bound)
    b = jax.random.uniform(kb, (1, fan_out), jnp.float32, -bound, bound)
    pi = fan_in if pad_in is None else pad_in
    po = fan_out if pad_out is None else pad_out
    w_p = jnp.zeros((pi, po), jnp.float32).at[:fan_in, :fan_out].set(w)
    b_p = jnp.zeros((1, po), jnp.float32).at[:, :fan_out].set(b)
    return w_p, b_p


def init_gin_params(key, nfeat, nhid, nclass, nlayer):
    keys = jax.random.split(key, 3 + 2 * nlayer)
    pre = init_linear(keys[0], nfeat, nhid, pad_out=H_PAD)
    post = init_linear(keys[1], nhid, nhid, pad_in=H_PAD, pad_out=H_PAD)
    readout = init_linear(keys[2], nhid, nclass, pad_in=H_PAD)
    w1s, b1s, w2s, b2s = [], [], [], []
    for l in range(nlayer):
        w1, b1 = init_linear(keys[3 + 2 * l], nhid, nhid, pad_in=H_PAD, pad_out=H_PAD)
        w2, b2 = init_linear(keys[4 + 2 * l], nhid, nhid, pad_in=H_PAD, pad_out=H_PAD)
        w1s.append(w1); b1s.append(b1); w2s.append(w2); b2s.append(b2)
    return {
        "pre": pre,
        "w1": jnp.stack(w1s), "b1": jnp.stack(b1s),
        "w2": jnp.stack(w2s), "b2": jnp.stack(b2s),
        "post": post,
        "readout": readout,
    }


def gin_forward(params, x, A_hat_bf16, P):
    """Eval-mode forward of GIN (dropout = identity), fully fused in one kernel."""
    n = x.shape[0]
    num_graphs = P.shape[0]
    nclass = params["readout"][0].shape[1]
    nlayer = params["w1"].shape[0]

    args = (
        A_hat_bf16, x,
        params["pre"][0], params["pre"][1],
        params["w1"], params["b1"], params["w2"], params["b2"],
        P, params["post"][0], params["post"][1],
        params["readout"][0], params["readout"][1],
    )
    return pl.pallas_call(
        functools.partial(gin_fused_kernel, nlayer),
        out_shape=jax.ShapeDtypeStruct((num_graphs, nclass), jnp.float32),
        in_specs=[_vmem_spec() for _ in args],
        out_specs=_vmem_spec(),
        scratch_shapes=[pltpu.VMEM((n, H_PAD), jnp.float32)],
        compiler_params=pltpu.CompilerParams(vmem_limit_bytes=48 * 1024 * 1024),
    )(*args)


# ------------------------------------------------------------- reference ----

def gin_reference(params, x, A_hat_f32, P):
    h = x @ params["pre"][0] + params["pre"][1]
    for l in range(params["w1"].shape[0]):
        agg = A_hat_f32 @ h
        t = jnp.maximum(agg @ params["w1"][l] + params["b1"][l], 0.0)
        t = t @ params["w2"][l] + params["b2"][l]
        h = jnp.maximum(t, 0.0)
    g = P @ h
    g = jnp.maximum(g @ params["post"][0] + params["post"][1], 0.0)
    logits = g @ params["readout"][0] + params["readout"][1]
    return jax.nn.log_softmax(logits, axis=1)


# ------------------------------------------------------------------ main ----

if __name__ == "__main__":
    nfeat, nhid, nclass, nlayer, dropout = 16, 32, 8, 2, 0.5
    num_graphs, nodes_per_graph = 2, 8
    N = num_graphs * nodes_per_graph

    key = jax.random.PRNGKey(0)
    k_param, k_x = jax.random.split(key)

    params = init_gin_params(k_param, nfeat, nhid, nclass, nlayer)

    # node features
    x = jax.random.normal(k_x, (N, nfeat), jnp.float32)

    # deterministic bidirectional ring graph within each of the 2 graphs
    edges = []
    for g in range(num_graphs):
        base = g * nodes_per_graph
        for i in range(nodes_per_graph):
            s = base + i
            d = base + (i + 1) % nodes_per_graph
            edges.append((s, d))
            edges.append((d, s))
    edge_index = jnp.asarray(edges, dtype=jnp.int32).T  # (2, E)
    batch = jnp.asarray(
        sum(([g] * nodes_per_graph for g in range(num_graphs)), []), dtype=jnp.int32
    )

    # dense aggregation / pooling operators (glue)
    A = jnp.zeros((N, N), jnp.float32).at[edge_index[1], edge_index[0]].add(1.0)
    eps = 0.0
    A_hat = A + (1.0 + eps) * jnp.eye(N, dtype=jnp.float32)  # fold GIN self term
    A_hat_bf16 = A_hat.astype(jnp.bfloat16)                  # exact: small integers
    P = (batch[None, :] == jnp.arange(num_graphs)[:, None]).astype(jnp.float32)

    out = gin_forward(params, x, A_hat_bf16, P)
    out = jax.block_until_ready(out)

    ref = gin_reference(params, x, A_hat, P)

    assert out.shape == (num_graphs, nclass)
    # rows of log_softmax must exp-sum to 1
    assert jnp.allclose(jnp.sum(jnp.exp(out), axis=1), 1.0, atol=1e-4)
    # match the plain-JAX reference
    assert jnp.allclose(out, ref, atol=1e-4, rtol=1e-4)
    print("KERNEL_OK")
</pallas_src>

<mosaic_0001>
module attributes {stable_mosaic.version = 11 : i64} {
  func.func @gin_fused_kernel(%arg0: memref<16x16xbf16, #tpu.memory_space<vmem>>, %arg1: memref<16x16xf32, #tpu.memory_space<vmem>>, %arg2: memref<16x128xf32, #tpu.memory_space<vmem>>, %arg3: memref<1x128xf32, #tpu.memory_space<vmem>>, %arg4: memref<2x128x128xf32, #tpu.memory_space<vmem>>, %arg5: memref<2x1x128xf32, #tpu.memory_space<vmem>>, %arg6: memref<2x128x128xf32, #tpu.memory_space<vmem>>, %arg7: memref<2x1x128xf32, #tpu.memory_space<vmem>>, %arg8: memref<2x16xf32, #tpu.memory_space<vmem>>, %arg9: memref<128x128xf32, #tpu.memory_space<vmem>>, %arg10: memref<1x128xf32, #tpu.memory_space<vmem>>, %arg11: memref<128x8xf32, #tpu.memory_space<vmem>>, %arg12: memref<1x8xf32, #tpu.memory_space<vmem>>, %arg13: memref<2x8xf32, #tpu.memory_space<vmem>>, %arg14: memref<16x128xf32, #tpu.memory_space<vmem>>) attributes {dimension_semantics = [], scalar_prefetch = 0 : i64, scratch_operands = 1 : i64, tpu.core_type = #tpu.core_type<tc>} {
    %c0 = arith.constant 0 : index
    %c0_0 = arith.constant 0 : index
    %0 = vector.load %arg1[%c0, %c0_0] : memref<16x16xf32, #tpu.memory_space<vmem>>, vector<16x16xf32>
    %c0_1 = arith.constant 0 : index
    %c0_2 = arith.constant 0 : index
    %1 = vector.load %arg2[%c0_1, %c0_2] : memref<16x128xf32, #tpu.memory_space<vmem>>, vector<16x128xf32>
    %cst = arith.constant dense<0.000000e+00> : vector<16x128xf32>
    %2 = tpu.matmul %0, %1, %cst {dimension_numbers = #tpu.dot_dimension_numbers<[1], [0], [0], [1], [0, 0, 1, 1], [], []>} : vector<16x16xf32>, vector<16x128xf32>, vector<16x128xf32> -> vector<16x128xf32>
    %c0_3 = arith.constant 0 : index
    %c0_4 = arith.constant 0 : index
    %3 = vector.load %arg3[%c0_3, %c0_4] : memref<1x128xf32, #tpu.memory_space<vmem>>, vector<1x128xf32>
    %4 = vector.broadcast %3 : vector<1x128xf32> to vector<16x128xf32>
    %5 = arith.addf %2, %4 : vector<16x128xf32>
    %c0_5 = arith.constant 0 : index
    %c0_6 = arith.constant 0 : index
    %6 = vector.load %arg14[%c0_5, %c0_6] : memref<16x128xf32, #tpu.memory_space<vmem>>, vector<16x128xf32>
    tpu.vector_store %arg14[%c0_5, %c0_6], %5 {strides = array<i32>} : memref<16x128xf32, #tpu.memory_space<vmem>>, vector<16x128xf32>,
    %c0_i32 = arith.constant 0 : i32
    %c0_7 = arith.constant 0 : index
    %c0_8 = arith.constant 0 : index
    %7 = vector.load %arg14[%c0_7, %c0_8] : memref<16x128xf32, #tpu.memory_space<vmem>>, vector<16x128xf32>
    %c0_9 = arith.constant 0 : index
    %c0_10 = arith.constant 0 : index
    %8 = vector.load %arg0[%c0_9, %c0_10] : memref<16x16xbf16, #tpu.memory_space<vmem>>, vector<16x16xbf16>
    %9 = arith.extf %8 : vector<16x16xbf16> to vector<16x16xf32>
    %cst_11 = arith.constant dense<0.000000e+00> : vector<16x128xf32>
    %10 = tpu.matmul %9, %7, %cst_11 {dimension_numbers = #tpu.dot_dimension_numbers<[1], [0], [0], [1], [0, 0, 1, 1], [], []>} : vector<16x16xf32>, vector<16x128xf32>, vector<16x128xf32> -> vector<16x128xf32>
    %11 = arith.index_cast %c0_i32 : i32 to index
    %c0_12 = arith.constant 0 : index
    %c0_13 = arith.constant 0 : index
    %12 = vector.load %arg4[%11, %c0_12, %c0_13] : memref<2x128x128xf32, #tpu.memory_space<vmem>>, vector<1x128x128xf32>
    %13 = vector.shape_cast %12 : vector<1x128x128xf32> to vector<128x128xf32>
    %cst_14 = arith.constant dense<0.000000e+00> : vector<16x128xf32>
    %14 = tpu.matmul %10, %13, %cst_14 {dimension_numbers = #tpu.dot_dimension_numbers<[1], [0], [0], [1], [0, 0, 1, 1], [], []>} : vector<16x128xf32>, vector<128x128xf32>, vector<16x128xf32> -> vector<16x128xf32>
    %15 = arith.index_cast %c0_i32 : i32 to index
    %c0_15 = arith.constant 0 : index
    %c0_16 = arith.constant 0 : index
    %16 = vector.load %arg5[%15, %c0_15, %c0_16] : memref<2x1x128xf32, #tpu.memory_space<vmem>>, vector<1x1x128xf32>
    %17 = vector.shape_cast %16 : vector<1x1x128xf32> to vector<1x128xf32>
    %18 = vector.broadcast %17 : vector<1x128xf32> to vector<16x128xf32>
    %19 = arith.addf %14, %18 : vector<16x128xf32>
    %cst_17 = arith.constant 0.000000e+00 : f32
    %20 = vector.broadcast %cst_17 : f32 to vector<16x128xf32>
    %21 = arith.maximumf %19, %20 : vector<16x128xf32>
    %22 = arith.index_cast %c0_i32 : i32 to index
    %c0_18 = arith.constant 0 : index
    %c0_19 = arith.constant 0 : index
    %23 = vector.load %arg6[%22, %c0_18, %c0_19] : memref<2x128x128xf32, #tpu.memory_space<vmem>>, vector<1x128x128xf32>
    %24 = vector.shape_cast %23 : vector<1x128x128xf32> to vector<128x128xf32>
    %cst_20 = arith.constant dense<0.000000e+00> : vector<16x128xf32>
    %25 = tpu.matmul %21, %24, %cst_20 {dimension_numbers = #tpu.dot_dimension_numbers<[1], [0], [0], [1], [0, 0, 1, 1], [], []>} : vector<16x128xf32>, vector<128x128xf32>, vector<16x128xf32> -> vector<16x128xf32>
    %26 = arith.index_cast %c0_i32 : i32 to index
    %c0_21 = arith.constant 0 : index
    %c0_22 = arith.constant 0 : index
    %27 = vector.load %arg7[%26, %c0_21, %c0_22] : memref<2x1x128xf32, #tpu.memory_space<vmem>>, vector<1x1x128xf32>
    %28 = vector.shape_cast %27 : vector<1x1x128xf32> to vector<1x128xf32>
    %29 = vector.broadcast %28 : vector<1x128xf32> to vector<16x128xf32>
    %30 = arith.addf %25, %29 : vector<16x128xf32>
    %cst_23 = arith.constant 0.000000e+00 : f32
    %31 = vector.broadcast %cst_23 : f32 to vector<16x128xf32>
    %32 = arith.maximumf %30, %31 : vector<16x128xf32>
    %c0_24 = arith.constant 0 : index
    %c0_25 = arith.constant 0 : index
    %33 = vector.load %arg14[%c0_24, %c0_25] : memref<16x128xf32, #tpu.memory_space<vmem>>, vector<16x128xf32>
    tpu.vector_store %arg14[%c0_24, %c0_25], %32 {strides = array<i32>} : memref<16x128xf32, #tpu.memory_space<vmem>>, vector<16x128xf32>,
    %c1_i32 = arith.constant 1 : i32
    %c0_26 = arith.constant 0 : index
    %c0_27 = arith.constant 0 : index
    %34 = vector.load %arg14[%c0_26, %c0_27] : memref<16x128xf32, #tpu.memory_space<vmem>>, vector<16x128xf32>
    %c0_28 = arith.constant 0 : index
    %c0_29 = arith.constant 0 : index
    %35 = vector.load %arg0[%c0_28, %c0_29] : memref<16x16xbf16, #tpu.memory_space<vmem>>, vector<16x16xbf16>
    %36 = arith.extf %35 : vector<16x16xbf16> to vector<16x16xf32>
    %cst_30 = arith.constant dense<0.000000e+00> : vector<16x128xf32>
    %37 = tpu.matmul %36, %34, %cst_30 {dimension_numbers = #tpu.dot_dimension_numbers<[1], [0], [0], [1], [0, 0, 1, 1], [], []>} : vector<16x16xf32>, vector<16x128xf32>, vector<16x128xf32> -> vector<16x128xf32>
    %38 = arith.index_cast %c1_i32 : i32 to index
    %c0_31 = arith.constant 0 : index
    %c0_32 = arith.constant 0 : index
    %39 = vector.load %arg4[%38, %c0_31, %c0_32] : memref<2x128x128xf32, #tpu.memory_space<vmem>>, vector<1x128x128xf32>
    %40 = vector.shape_cast %39 : vector<1x128x128xf32> to vector<128x128xf32>
    %cst_33 = arith.constant dense<0.000000e+00> : vector<16x128xf32>
    %41 = tpu.matmul %37, %40, %cst_33 {dimension_numbers = #tpu.dot_dimension_numbers<[1], [0], [0], [1], [0, 0, 1, 1], [], []>} : vector<16x128xf32>, vector<128x128xf32>, vector<16x128xf32> -> vector<16x128xf32>
    %42 = arith.index_cast %c1_i32 : i32 to index
    %c0_34 = arith.constant 0 : index
    %c0_35 = arith.constant 0 : index
    %43 = vector.load %arg5[%42, %c0_34, %c0_35] : memref<2x1x128xf32, #tpu.memory_space<vmem>>, vector<1x1x128xf32>
    %44 = vector.shape_cast %43 : vector<1x1x128xf32> to vector<1x128xf32>
    %45 = vector.broadcast %44 : vector<1x128xf32> to vector<16x128xf32>
    %46 = arith.addf %41, %45 : vector<16x128xf32>
    %cst_36 = arith.constant 0.000000e+00 : f32
    %47 = vector.broadcast %cst_36 : f32 to vector<16x128xf32>
    %48 = arith.maximumf %46, %47 : vector<16x128xf32>
    %49 = arith.index_cast %c1_i32 : i32 to index
    %c0_37 = arith.constant 0 : index
    %c0_38 = arith.constant 0 : index
    %50 = vector.load %arg6[%49, %c0_37, %c0_38] : memref<2x128x128xf32, #tpu.memory_space<vmem>>, vector<1x128x128xf32>
    %51 = vector.shape_cast %50 : vector<1x128x128xf32> to vector<128x128xf32>
    %cst_39 = arith.constant dense<0.000000e+00> : vector<16x128xf32>
    %52 = tpu.matmul %48, %51, %cst_39 {dimension_numbers = #tpu.dot_dimension_numbers<[1], [0], [0], [1], [0, 0, 1, 1], [], []>} : vector<16x128xf32>, vector<128x128xf32>, vector<16x128xf32> -> vector<16x128xf32>
    %53 = arith.index_cast %c1_i32 : i32 to index
    %c0_40 = arith.constant 0 : index
    %c0_41 = arith.constant 0 : index
    %54 = vector.load %arg7[%53, %c0_40, %c0_41] : memref<2x1x128xf32, #tpu.memory_space<vmem>>, vector<1x1x128xf32>
    %55 = vector.shape_cast %54 : vector<1x1x128xf32> to vector<1x128xf32>
    %56 = vector.broadcast %55 : vector<1x128xf32> to vector<16x128xf32>
    %57 = arith.addf %52, %56 : vector<16x128xf32>
    %cst_42 = arith.constant 0.000000e+00 : f32
    %58 = vector.broadcast %cst_42 : f32 to vector<16x128xf32>
    %59 = arith.maximumf %57, %58 : vector<16x128xf32>
    %c0_43 = arith.constant 0 : index
    %c0_44 = arith.constant 0 : index
    %60 = vector.load %arg14[%c0_43, %c0_44] : memref<16x128xf32, #tpu.memory_space<vmem>>, vector<16x128xf32>
    tpu.vector_store %arg14[%c0_43, %c0_44], %59 {strides = array<i32>} : memref<16x128xf32, #tpu.memory_space<vmem>>, vector<16x128xf32>,
    %c2_i32 = arith.constant 2 : i32
    %c0_45 = arith.constant 0 : index
    %c0_46 = arith.constant 0 : index
    %61 = vector.load %arg8[%c0_45, %c0_46] : memref<2x16xf32, #tpu.memory_space<vmem>>, vector<2x16xf32>
    %c0_47 = arith.constant 0 : index
    %c0_48 = arith.constant 0 : index
    %62 = vector.load %arg14[%c0_47, %c0_48] : memref<16x128xf32, #tpu.memory_space<vmem>>, vector<16x128xf32>
    %cst_49 = arith.constant dense<0.000000e+00> : vector<2x128xf32>
    %63 = tpu.matmul %61, %62, %cst_49 {dimension_numbers = #tpu.dot_dimension_numbers<[1], [0], [0], [1], [0, 0, 1, 1], [], []>} : vector<2x16xf32>, vector<16x128xf32>, vector<2x128xf32> -> vector<2x128xf32>
    %c0_50 = arith.constant 0 : index
    %c0_51 = arith.constant 0 : index
    %64 = vector.load %arg9[%c0_50, %c0_51] : memref<128x128xf32, #tpu.memory_space<vmem>>, vector<128x128xf32>
    %cst_52 = arith.constant dense<0.000000e+00> : vector<2x128xf32>
    %65 = tpu.matmul %63, %64, %cst_52 {dimension_numbers = #tpu.dot_dimension_numbers<[1], [0], [0], [1], [0, 0, 1, 1], [], []>} : vector<2x128xf32>, vector<128x128xf32>, vector<2x128xf32> -> vector<2x128xf32>
    %c0_53 = arith.constant 0 : index
    %c0_54 = arith.constant 0 : index
    %66 = vector.load %arg10[%c0_53, %c0_54] : memref<1x128xf32, #tpu.memory_space<vmem>>, vector<1x128xf32>
    %67 = vector.broadcast %66 : vector<1x128xf32> to vector<2x128xf32>
    %68 = arith.addf %65, %67 : vector<2x128xf32>
    %cst_55 = arith.constant 0.000000e+00 : f32
    %69 = vector.broadcast %cst_55 : f32 to vector<2x128xf32>
    %70 = arith.maximumf %68, %69 : vector<2x128xf32>
    %c0_56 = arith.constant 0 : index
    %c0_57 = arith.constant 0 : index
    %71 = vector.load %arg11[%c0_56, %c0_57] : memref<128x8xf32, #tpu.memory_space<vmem>>, vector<128x8xf32>
    %cst_58 = arith.constant dense<0.000000e+00> : vector<2x8xf32>
    %72 = tpu.matmul %70, %71, %cst_58 {dimension_numbers = #tpu.dot_dimension_numbers<[1], [0], [0], [1], [0, 0, 1, 1], [], []>} : vector<2x128xf32>, vector<128x8xf32>, vector<2x8xf32> -> vector<2x8xf32>
    %c0_59 = arith.constant 0 : index
    %c0_60 = arith.constant 0 : index
    %73 = vector.load %arg12[%c0_59, %c0_60] : memref<1x8xf32, #tpu.memory_space<vmem>>, vector<1x8xf32>
    %74 = vector.broadcast %73 : vector<1x8xf32> to vector<2x8xf32>
    %75 = arith.addf %72, %74 : vector<2x8xf32>
    %cst_61 = arith.constant dense<0xFF800000> : vector<2xf32>
    %76 = vector.multi_reduction <maximumf>, %75, %cst_61 [1] : vector<2x8xf32> to vector<2xf32>
    %77 = vector.shape_cast %76 : vector<2xf32> to vector<2x1xf32>
    %78 = vector.broadcast %77 : vector<2x1xf32> to vector<2x8xf32>
    %79 = arith.subf %75, %78 : vector<2x8xf32>
    %80 = math.exp %79 : vector<2x8xf32>
    %cst_62 = arith.constant dense<0.000000e+00> : vector<2xf32>
    %81 = vector.multi_reduction <add>, %80, %cst_62 [1] : vector<2x8xf32> to vector<2xf32>
    %82 = vector.shape_cast %81 : vector<2xf32> to vector<2x1xf32>
    %83 = math.log %82 : vector<2x1xf32>
    %84 = vector.broadcast %83 : vector<2x1xf32> to vector<2x8xf32>
    %85 = arith.subf %79, %84 : vector<2x8xf32>
    %c0_63 = arith.constant 0 : index
    %c0_64 = arith.constant 0 : index
    %86 = vector.load %arg13[%c0_63, %c0_64] : memref<2x8xf32, #tpu.memory_space<vmem>>, vector<2x8xf32>
    tpu.vector_store %arg13[%c0_63, %c0_64], %85 {strides = array<i32>} : memref<2x8xf32, #tpu.memory_space<vmem>>, vector<2x8xf32>,
    return
  }
}

</mosaic_0001>

<llo_original>
// kernel: tpu_custom_call.1
$region0: #{tpu_custom_call.1}
  #allocation0 [shape = 'u32[]', space=smem, size = 0x4, offset = 0x4, fixed_abs, tag = 'smem constant byte address 0x4 - core index']
  #allocation1 [shape = 'u32[72,128]{1,0:T(1,128)}', space=vmem, size = 0x9000, scoped, tag = 'internal scratch']
  #allocation2 [shape = 'f32[16,128]{1,0:T(8,128)}', space=vmem, size = 0x2000, scoped, tag = 'scratch operand']
  %s0 = inlined_call_operand.vmem [shape: bf16[16,16], index: 0, kind: input, shape index: {}]
  %s1 = inlined_call_operand.hbm [shape: f32[16,16], index: 1, kind: input, shape index: {}]
  %s2 = inlined_call_operand.hbm [shape: f32[16,128], index: 2, kind: input, shape index: {}]
  %s3 = inlined_call_operand.hbm [shape: f32[1,128], index: 3, kind: input, shape index: {}]
  %s4 = inlined_call_operand.hbm [shape: f32[2,128,128], index: 4, kind: input, shape index: {}]
  %s5 = inlined_call_operand.vmem [shape: f32[2,1,128], index: 5, kind: input, shape index: {}]
  %s6 = inlined_call_operand.hbm [shape: f32[2,128,128], index: 6, kind: input, shape index: {}]
  %s7 = inlined_call_operand.hbm [shape: f32[2,1,128], index: 7, kind: input, shape index: {}]
  %s8 = inlined_call_operand.hbm [shape: f32[2,16], index: 8, kind: input, shape index: {}]
  %s9 = inlined_call_operand.vmem [shape: f32[128,128], index: 9, kind: input, shape index: {}]
  %s10 = inlined_call_operand.hbm [shape: f32[1,128], index: 10, kind: input, shape index: {}]
  %s11 = inlined_call_operand.vmem [shape: f32[128,8], index: 11, kind: input, shape index: {}]
  %s12 = inlined_call_operand.vmem [shape: f32[1,8], index: 12, kind: input, shape index: {}]
  %s13 = inlined_call_operand.hbm [shape: f32[2,8], index: 13, kind: output, shape index: {}]
  %s14 = sld [smem:[#allocation0]]
  $region94: #{tpu_custom_call.1} parent=0
    _
  %s16 = ssub.s32 1, %s14
  %s17 = scalar_select 0, %s16, %s14
  $region1: #{tpu_custom_call.1} parent=0
    #allocation3 [shape = 'u8[8192]{0}', space=vmem, size = 0x2000, scoped, tag = 'input window, operand 1, single buffered']
    #allocation4 [shape = 's32[1]{0}', space=sflag, size = 0x4, scoped, tag = 'scoped memory for tpu_custom_call.1']
    #allocation5 [shape = 's32[1]{0}', space=sflag, size = 0x4, scoped, tag = 'scoped memory for tpu_custom_call.1']
    #allocation6 [shape = 'u8[8192]{0}', space=vmem, size = 0x2000, scoped, tag = 'input window, operand 2, single buffered']
    #allocation7 [shape = 's32[1]{0}', space=sflag, size = 0x4, scoped, tag = 'scoped memory for tpu_custom_call.1']
    #allocation8 [shape = 'u8[512]{0}', space=vmem, size = 0x400, scoped, tag = 'input window, operand 3, single buffered']
    #allocation9 [shape = 'u8[131072]{0}', space=vmem, size = 0x20000, scoped, tag = 'input window, operand 4, single buffered']
    #allocation10 [shape = 's32[1]{0}', space=sflag, size = 0x4, scoped, tag = 'scoped memory for tpu_custom_call.1']
    #allocation11 [shape = 'u8[131072]{0}', space=vmem, size = 0x20000, scoped, tag = 'input window, operand 6, single buffered']
    #allocation12 [shape = 'u8[1024]{0}', space=vmem, size = 0x400, scoped, tag = 'input window, operand 7, single buffered']
    #allocation13 [shape = 's32[1]{0}', space=sflag, size = 0x4, scoped, tag = 'scoped memory for tpu_custom_call.1']
    #allocation14 [shape = 'u8[1024]{0}', space=vmem, size = 0x400, scoped, tag = 'input window, operand 8, single buffered']
    #allocation15 [shape = 'u8[512]{0}', space=vmem, size = 0x400, scoped, tag = 'input window, operand 10, single buffered']
    #allocation16 [shape = 's32[1]{0}', space=sflag, size = 0x4, scoped, tag = 'scoped memory for tpu_custom_call.1']
    #allocation17 [shape = 'u8[1024]{0}', space=vmem, size = 0x400, scoped, tag = 'output window, operand 0, single buffered']
    %18 = vsyncpa [#allocation4], 0
    %19 = vsyncpa [#allocation7], 0
    %20 = vsyncpa [#allocation10], 0
    %21 = vsyncpa [#allocation13], 0
    %22 = vsyncpa [#allocation16], 0
    %23 = vsyncpa [#allocation5], 0
    // Predicated region
    $region2: #{tpu_custom_call.1} parent=1 // pred_check
      _
    $region3: #{tpu_custom_call.1} parent=1 // pred_check_branch
      %25 = sbr.rel (0) target = $region5
    $region4: #{tpu_custom_call.1} parent=1 // pred_region
      _
    $region5: #{tpu_custom_call.1} parent=1 // pred_fallthru
      _
    // Predicated region
    $region6: #{tpu_custom_call.1} parent=1 // pred_check
      _
    $region7: #{tpu_custom_call.1} parent=1 // pred_check_branch
      %27 = sbr.rel (0) target = $region9
    $region8: #{tpu_custom_call.1} parent=1 // pred_region
      %29 = vsyncadd [#allocation4], 0
      %s30 = sshll.u32 %s1, 4
      %s31 = int_to_ptr.hbm [resolvable:$true] %s30
      %s32 = sshll.u32 [#allocation3], 4
      %s33 = int_to_ptr.vmem [resolvable:$true] %s32
      %38 = dma.hbm_to_vmem [thread:$0]  %s31, 256, %s33, [#allocation4], 128, 128, 8
    $region9: #{tpu_custom_call.1} parent=1 // pred_fallthru
      _
    // Predicated region
    $region10: #{tpu_custom_call.1} parent=1 // pred_check
      _
    $region11: #{tpu_custom_call.1} parent=1 // pred_check_branch
      %40 = sbr.rel (0) target = $region13
    $region12: #{tpu_custom_call.1} parent=1 // pred_region
      %42 = vsyncadd [#allocation7], 0
      %s43 = sshll.u32 %s2, 4
      %s44 = int_to_ptr.hbm [resolvable:$true] %s43
      %s45 = sshll.u32 [#allocation6], 4
      %s46 = int_to_ptr.vmem [resolvable:$true] %s45
      %51 = dma.hbm_to_vmem [thread:$0]  %s44, 256, %s46, [#allocation7], 128, 128, 8
    $region13: #{tpu_custom_call.1} parent=1 // pred_fallthru
      _
    // Predicated region
    $region14: #{tpu_custom_call.1} parent=1 // pred_check
      _
    $region15: #{tpu_custom_call.1} parent=1 // pred_check_branch
      %53 = sbr.rel (0) target = $region17
    $region16: #{tpu_custom_call.1} parent=1 // pred_region
      %55 = vsyncadd [#allocation7], 0
      %s57 = sshll.u32 %s3, 4
      %s58 = int_to_ptr.hbm [resolvable:$true] %s57
      %s59 = sshll.u32 [#allocation8], 4
      %s60 = int_to_ptr.vmem [resolvable:$true] %s59
      %62 = dma.hbm_to_vmem [thread:$0]  %s58, 16, %s60, [#allocation7]
    $region17: #{tpu_custom_call.1} parent=1 // pred_fallthru
      _
    // Predicated region
    $region18: #{tpu_custom_call.1} parent=1 // pred_check
      _
    $region19: #{tpu_custom_call.1} parent=1 // pred_check_branch
      %64 = sbr.rel (0) target = $region21
    $region20: #{tpu_custom_call.1} parent=1 // pred_region
      %66 = vsyncadd [#allocation10], 0
      %s67 = sshll.u32 %s4, 4
      %s68 = int_to_ptr.hbm [resolvable:$true] %s67
      %s69 = sshll.u32 [#allocation9], 4
      %s70 = int_to_ptr.vmem [resolvable:$true] %s69
      %75 = dma.hbm_to_vmem [thread:$0]  %s68, 4096, %s70, [#allocation10], 128, 128, 8
    $region21: #{tpu_custom_call.1} parent=1 // pred_fallthru
      _
    // Predicated region
    $region22: #{tpu_custom_call.1} parent=1 // pred_check
      _
    $region23: #{tpu_custom_call.1} parent=1 // pred_check_branch
      %77 = sbr.rel (0) target = $region25
    $region24: #{tpu_custom_call.1} parent=1 // pred_region
      _
    $region25: #{tpu_custom_call.1} parent=1 // pred_fallthru
      _
    // Predicated region
    $region26: #{tpu_custom_call.1} parent=1 // pred_check
      _
    $region27: #{tpu_custom_call.1} parent=1 // pred_check_branch
      %79 = sbr.rel (0) target = $region29
    $region28: #{tpu_custom_call.1} parent=1 // pred_region
      %81 = vsyncadd [#allocation10], 0
      %s82 = sshll.u32 %s6, 4
      %s83 = int_to_ptr.hbm [resolvable:$true] %s82
      %s84 = sshll.u32 [#allocation11], 4
      %s85 = int_to_ptr.vmem [resolvable:$true] %s84
      %90 = dma.hbm_to_vmem [thread:$0]  %s83, 4096, %s85, [#allocation10], 128, 128, 8
    $region29: #{tpu_custom_call.1} parent=1 // pred_fallthru
      _
    // Predicated region
    $region30: #{tpu_custom_call.1} parent=1 // pred_check
      _
    $region31: #{tpu_custom_call.1} parent=1 // pred_check_branch
      %92 = sbr.rel (0) target = $region33
    $region32: #{tpu_custom_call.1} parent=1 // pred_region
      %94 = vsyncadd [#allocation13], 0
      %s95 = sshll.u32 %s7, 4
      %s96 = int_to_ptr.hbm [resolvable:$true] %s95
      %s97 = sshll.u32 [#allocation12], 4
      %s98 = int_to_ptr.vmem [resolvable:$true] %s97
      %103 = dma.hbm_to_vmem [thread:$0]  %s96, 32, %s98, [#allocation13], 16, 16, 1
    $region33: #{tpu_custom_call.1} parent=1 // pred_fallthru
      _
    // Predicated region
    $region34: #{tpu_custom_call.1} parent=1 // pred_check
      _
    $region35: #{tpu_custom_call.1} parent=1 // pred_check_branch
      %105 = sbr.rel (0) target = $region37
    $region36: #{tpu_custom_call.1} parent=1 // pred_region
      %107 = vsyncadd [#allocation13], 0
      %s109 = sshll.u32 %s8, 4
      %s110 = int_to_ptr.hbm [resolvable:$true] %s109
      %s111 = sshll.u32 [#allocation14], 4
      %s112 = int_to_ptr.vmem [resolvable:$true] %s111
      %114 = dma.hbm_to_vmem [thread:$0]  %s110, 32, %s112, [#allocation13]
    $region37: #{tpu_custom_call.1} parent=1 // pred_fallthru
      _
    // Predicated region
    $region38: #{tpu_custom_call.1} parent=1 // pred_check
      _
    $region39: #{tpu_custom_call.1} parent=1 // pred_check_branch
      %116 = sbr.rel (0) target = $region41
    $region40: #{tpu_custom_call.1} parent=1 // pred_region
      _
    $region41: #{tpu_custom_call.1} parent=1 // pred_fallthru
      _
    // Predicated region
    $region42: #{tpu_custom_call.1} parent=1 // pred_check
      _
    $region43: #{tpu_custom_call.1} parent=1 // pred_check_branch
      %118 = sbr.rel (0) target = $region45
    $region44: #{tpu_custom_call.1} parent=1 // pred_region
      %120 = vsyncadd [#allocation16], 0
      %s122 = sshll.u32 %s10, 4
      %s123 = int_to_ptr.hbm [resolvable:$true] %s122
      %s124 = sshll.u32 [#allocation15], 4
      %s125 = int_to_ptr.vmem [resolvable:$true] %s124
      %127 = dma.hbm_to_vmem [thread:$0]  %s123, 16, %s125, [#allocation16]
    $region45: #{tpu_custom_call.1} parent=1 // pred_fallthru
      _
    // Predicated region
    $region46: #{tpu_custom_call.1} parent=1 // pred_check
      _
    $region47: #{tpu_custom_call.1} parent=1 // pred_check_branch
      %129 = sbr.rel (0) target = $region49
    $region48: #{tpu_custom_call.1} parent=1 // pred_region
      _
    $region49: #{tpu_custom_call.1} parent=1 // pred_fallthru
      _
    // Predicated region
    $region50: #{tpu_custom_call.1} parent=1 // pred_check
      _
    $region51: #{tpu_custom_call.1} parent=1 // pred_check_branch
      %131 = sbr.rel (0) target = $region53
    $region52: #{tpu_custom_call.1} parent=1 // pred_region
      _
    $region53: #{tpu_custom_call.1} parent=1 // pred_fallthru
      _
    // Predicated region
    $region54: #{tpu_custom_call.1} parent=1 // pred_check
      _
    $region55: #{tpu_custom_call.1} parent=1 // pred_check_branch
      %133 = sbr.rel (0) target = $region57
    $region56: #{tpu_custom_call.1} parent=1 // pred_region
      %135 = dma.done [#allocation4], 256
    $region57: #{tpu_custom_call.1} parent=1 // pred_fallthru
      _
    // Predicated region
    $region58: #{tpu_custom_call.1} parent=1 // pred_check
      _
    $region59: #{tpu_custom_call.1} parent=1 // pred_check_branch
      %137 = sbr.rel (0) target = $region61
    $region60: #{tpu_custom_call.1} parent=1 // pred_region
      %139 = dma.done [#allocation7], 256
    $region61: #{tpu_custom_call.1} parent=1 // pred_fallthru
      _
    // Predicated region
    $region62: #{tpu_custom_call.1} parent=1 // pred_check
      _
    $region63: #{tpu_custom_call.1} parent=1 // pred_check_branch
      %141 = sbr.rel (0) target = $region65
    $region64: #{tpu_custom_call.1} parent=1 // pred_region
      %143 = dma.done [#allocation7], 16
    $region65: #{tpu_custom_call.1} parent=1 // pred_fallthru
      _
    // Predicated region
    $region66: #{tpu_custom_call.1} parent=1 // pred_check
      _
    $region67: #{tpu_custom_call.1} parent=1 // pred_check_branch
      %145 = sbr.rel (0) target = $region69
    $region68: #{tpu_custom_call.1} parent=1 // pred_region
      %147 = dma.done [#allocation10], 4096
    $region69: #{tpu_custom_call.1} parent=1 // pred_fallthru
      _
    // Predicated region
    $region70: #{tpu_custom_call.1} parent=1 // pred_check
      _
    $region71: #{tpu_custom_call.1} parent=1 // pred_check_branch
      %149 = sbr.rel (0) target = $region73
    $region72: #{tpu_custom_call.1} parent=1 // pred_region
      %151 = dma.done [#allocation10], 4096
    $region73: #{tpu_custom_call.1} parent=1 // pred_fallthru
      _
    // Predicated region
    $region74: #{tpu_custom_call.1} parent=1 // pred_check
      _
    $region75: #{tpu_custom_call.1} parent=1 // pred_check_branch
      %153 = sbr.rel (0) target = $region77
    $region76: #{tpu_custom_call.1} parent=1 // pred_region
      %155 = dma.done [#allocation13], 32
    $region77: #{tpu_custom_call.1} parent=1 // pred_fallthru
      _
    // Predicated region
    $region78: #{tpu_custom_call.1} parent=1 // pred_check
      _
    $region79: #{tpu_custom_call.1} parent=1 // pred_check_branch
      %157 = sbr.rel (0) target = $region81
    $region80: #{tpu_custom_call.1} parent=1 // pred_region
      %159 = dma.done [#allocation13], 32
    $region81: #{tpu_custom_call.1} parent=1 // pred_fallthru
      _
    // Predicated region
    $region82: #{tpu_custom_call.1} parent=1 // pred_check
      _
    $region83: #{tpu_custom_call.1} parent=1 // pred_check_branch
      %161 = sbr.rel (0) target = $region85
    $region84: #{tpu_custom_call.1} parent=1 // pred_region
      %163 = dma.done [#allocation16], 16
    $region85: #{tpu_custom_call.1} parent=1 // pred_fallthru
      _
    %v164 = vld [vmem:[#allocation3] sm:$0xff]
    %v165 = vld [vmem:[#allocation3 + $0x8] sm:$0xff]
    %v166 = vld [vmem:[#allocation6] sm:$0xff]
    %v167 = vld [vmem:[#allocation6 + $0x8] sm:$0xff]
    %v168 = vld [vmem:[#allocation8] sm:$0x1]
    %v170 = vperm.slane %v168, 0
    %vm172 = vcmask 130048
    %v174 = vsel %vm172, %v164, 0
    %v177 = vsel %vm172, %v165, 0
    %179 = vmatpush.msra.mxu0 0.0
    %180 = vmatpush.msra.mxu0 0.0
    %181 = vmatpush.msra.mxu0 0.0
    %182 = vmatpush.msra.mxu0 0.0
    %183 = vmatpush.msra.mxu0 0.0
    %184 = vmatpush.msra.mxu0 0.0
    %185 = vmatpush.msra.mxu0 0.0
    %186 = vmatpush.msra.mxu0 0.0
    %187 = vmatpush.msra.mxu0 0.0
    %188 = vmatpush.msra.mxu0 0.0
    %189 = vmatpush.msra.mxu0 0.0
    %190 = vmatpush.msra.mxu0 0.0
    %191 = vmatpush.msra.mxu0 0.0
    %192 = vmatpush.msra.mxu0 0.0
    %193 = vmatpush.msra.mxu0 %v167
    %194 = vmatpush.msra.mxu0 %v166
    %195 = vmatmul.f32.gmra.mxu0 %v174
    %v196 = vpop.f32.mrf.mxu0
    %v197 = vadd.f32 %v170, %v196
    %198 = vmatmul.f32.gmra.mxu0 %v177
    %v199 = vpop.f32.mrf.mxu0
    %v200 = vadd.f32 %v170, %v199
    %201 = vdwg.mxu0
    %202 = vst [vmem:[#allocation2] sm:$0xff] %v197
    %203 = vst [vmem:[#allocation2 + $0x8] sm:$0xff] %v200
    %v204 = vld [vmem:[#allocation2] sm:$0xff]
    %v205 = vld [vmem:[#allocation2 + $0x8] sm:$0xff]
    %v206 = vld [vmem:[%s0] sm:$0xf]
    %v207 = vld [vmem:[%s0 + $0x4] sm:$0xf]
    %v208 = vunpack.c.l.bf16 %v206
    %v209 = vunpack.c.l.bf16 %v207
    %v211 = vsel %vm172, %v208, 0
    %v214 = vsel %vm172, %v209, 0
    %216 = vmatpush.msra.mxu0 0.0
    %217 = vmatpush.msra.mxu0 0.0
    %218 = vmatpush.msra.mxu0 0.0
    %219 = vmatpush.msra.mxu0 0.0
    %220 = vmatpush.msra.mxu0 0.0
    %221 = vmatpush.msra.mxu0 0.0
    %222 = vmatpush.msra.mxu0 0.0
    %223 = vmatpush.msra.mxu0 0.0
    %224 = vmatpush.msra.mxu0 0.0
    %225 = vmatpush.msra.mxu0 0.0
    %226 = vmatpush.msra.mxu0 0.0
    %227 = vmatpush.msra.mxu0 0.0
    %228 = vmatpush.msra.mxu0 0.0
    %229 = vmatpush.msra.mxu0 0.0
    %230 = vmatpush.msra.mxu0 %v205
    %231 = vmatpush.msra.mxu0 %v204
    %232 = vmatmul.f32.gmra.mxu0 %v211
    %v233 = vpop.f32.mrf.mxu0
    %v234 = vadd.f32 0.0, %v233
    %235 = vmatmul.f32.gmra.mxu0 %v214
    %v236 = vpop.f32.mrf.mxu0
    %v237 = vadd.f32 0.0, %v236
    %238 = vdwg.mxu0
    %v239 = vld [vmem:[#allocation9] sm:$0xff]
    %v240 = vld [vmem:[#allocation9 + $0x8] sm:$0xff]
    %v241 = vld [vmem:[#allocation9 + $0x10] sm:$0xff]
    %v242 = vld [vmem:[#allocation9 + $0x18] sm:$0xff]
    %v243 = vld [vmem:[#allocation9 + $0x20] sm:$0xff]
    %v244 = vld [vmem:[#allocation9 + $0x28] sm:$0xff]
    %v245 = vld [vmem:[#allocation9 + $0x30] sm:$0xff]
    %v246 = vld [vmem:[#allocation9 + $0x38] sm:$0xff]
    %v247 = vld [vmem:[#allocation9 + $0x40] sm:$0xff]
    %v248 = vld [vmem:[#allocation9 + $0x48] sm:$0xff]
    %v249 = vld [vmem:[#allocation9 + $0x50] sm:$0xff]
    %v250 = vld [vmem:[#allocation9 + $0x58] sm:$0xff]
    %v251 = vld [vmem:[#allocation9 + $0x60] sm:$0xff]
    %v252 = vld [vmem:[#allocation9 + $0x68] sm:$0xff]
    %v253 = vld [vmem:[#allocation9 + $0x70] sm:$0xff]
    %v254 = vld [vmem:[#allocation9 + $0x78] sm:$0xff]
    %v255 = vld [vmem:[%s5] sm:$0x1]
    %v257 = vperm.slane %v255, 0
    %259 = vmatpush.msra.mxu0 %v254
    %260 = vmatpush.msra.mxu0 %v253
    %261 = vmatpush.msra.mxu0 %v252
    %262 = vmatpush.msra.mxu0 %v251
    %263 = vmatpush.msra.mxu0 %v250
    %264 = vmatpush.msra.mxu0 %v249
    %265 = vmatpush.msra.mxu0 %v248
    %266 = vmatpush.msra.mxu0 %v247
    %267 = vmatpush.msra.mxu0 %v246
    %268 = vmatpush.msra.mxu0 %v245
    %269 = vmatpush.msra.mxu0 %v244
    %270 = vmatpush.msra.mxu0 %v243
    %271 = vmatpush.msra.mxu0 %v242
    %272 = vmatpush.msra.mxu0 %v241
    %273 = vmatpush.msra.mxu0 %v240
    %274 = vmatpush.msra.mxu0 %v239
    %275 = vmatmul.f32.gmra.mxu0 %v234
    %v276 = vpop.f32.mrf.mxu0
    %v277 = vadd.f32 %v257, %v276
    %278 = vmatmul.f32.gmra.mxu0 %v237
    %v279 = vpop.f32.mrf.mxu0
    %v280 = vadd.f32 %v257, %v279
    %281 = vdwg.mxu0
    %v282 = vmax.f32 %v277, 0.0
    %v283 = vmax.f32 %v280, 0.0
    %v284 = vld [vmem:[#allocation11] sm:$0xff]
    %v285 = vld [vmem:[#allocation11 + $0x8] sm:$0xff]
    %v286 = vld [vmem:[#allocation11 + $0x10] sm:$0xff]
    %v287 = vld [vmem:[#allocation11 + $0x18] sm:$0xff]
    %v288 = vld [vmem:[#allocation11 + $0x20] sm:$0xff]
    %v289 = vld [vmem:[#allocation11 + $0x28] sm:$0xff]
    %v290 = vld [vmem:[#allocation11 + $0x30] sm:$0xff]
    %v291 = vld [vmem:[#allocation11 + $0x38] sm:$0xff]
    %v292 = vld [vmem:[#allocation11 + $0x40] sm:$0xff]
    %v293 = vld [vmem:[#allocation11 + $0x48] sm:$0xff]
    %v294 = vld [vmem:[#allocation11 + $0x50] sm:$0xff]
    %v295 = vld [vmem:[#allocation11 + $0x58] sm:$0xff]
    %v296 = vld [vmem:[#allocation11 + $0x60] sm:$0xff]
    %v297 = vld [vmem:[#allocation11 + $0x68] sm:$0xff]
    %v298 = vld [vmem:[#allocation11 + $0x70] sm:$0xff]
    %v299 = vld [vmem:[#allocation11 + $0x78] sm:$0xff]
    %v300 = vld [vmem:[#allocation12] sm:$0x1]
    %v302 = vperm.slane %v300, 0
    %304 = vmatpush.msra.mxu0 %v299
    %305 = vmatpush.msra.mxu0 %v298
    %306 = vmatpush.msra.mxu0 %v297
    %307 = vmatpush.msra.mxu0 %v296
    %308 = vmatpush.msra.mxu0 %v295
    %309 = vmatpush.msra.mxu0 %v294
    %310 = vmatpush.msra.mxu0 %v293
    %311 = vmatpush.msra.mxu0 %v292
    %312 = vmatpush.msra.mxu0 %v291
    %313 = vmatpush.msra.mxu0 %v290
    %314 = vmatpush.msra.mxu0 %v289
    %315 = vmatpush.msra.mxu0 %v288
    %316 = vmatpush.msra.mxu0 %v287
    %317 = vmatpush.msra.mxu0 %v286
    %318 = vmatpush.msra.mxu0 %v285
    %319 = vmatpush.msra.mxu0 %v284
    %320 = vmatmul.f32.gmra.mxu0 %v282
    %v321 = vpop.f32.mrf.mxu0
    %v322 = vadd.f32 %v302, %v321
    %323 = vmatmul.f32.gmra.mxu0 %v283
    %v324 = vpop.f32.mrf.mxu0
    %v325 = vadd.f32 %v302, %v324
    %326 = vdwg.mxu0
    %v327 = vmax.f32 %v322, 0.0
    %v328 = vmax.f32 %v325, 0.0
    %329 = vst [vmem:[#allocation2] sm:$0xff] %v327
    %330 = vst [vmem:[#allocation2 + $0x8] sm:$0xff] %v328
    %v331 = vld [vmem:[#allocation2] sm:$0xff]
    %v332 = vld [vmem:[#allocation2 + $0x8] sm:$0xff]
    %v333 = vld [vmem:[%s0] sm:$0xf]
    %v334 = vld [vmem:[%s0 + $0x4] sm:$0xf]
    %v335 = vunpack.c.l.bf16 %v333
    %v336 = vunpack.c.l.bf16 %v334
    %v338 = vsel %vm172, %v335, 0
    %v341 = vsel %vm172, %v336, 0
    %343 = vmatpush.msra.mxu0 0.0
    %344 = vmatpush.msra.mxu0 0.0
    %345 = vmatpush.msra.mxu0 0.0
    %346 = vmatpush.msra.mxu0 0.0
    %347 = vmatpush.msra.mxu0 0.0
    %348 = vmatpush.msra.mxu0 0.0
    %349 = vmatpush.msra.mxu0 0.0
    %350 = vmatpush.msra.mxu0 0.0
    %351 = vmatpush.msra.mxu0 0.0
    %352 = vmatpush.msra.mxu0 0.0
    %353 = vmatpush.msra.mxu0 0.0
    %354 = vmatpush.msra.mxu0 0.0
    %355 = vmatpush.msra.mxu0 0.0
    %356 = vmatpush.msra.mxu0 0.0
    %357 = vmatpush.msra.mxu0 %v332
    %358 = vmatpush.msra.mxu0 %v331
    %359 = vmatmul.f32.gmra.mxu0 %v338
    %v360 = vpop.f32.mrf.mxu0
    %v361 = vadd.f32 0.0, %v360
    %362 = vmatmul.f32.gmra.mxu0 %v341
    %v363 = vpop.f32.mrf.mxu0
    %v364 = vadd.f32 0.0, %v363
    %365 = vdwg.mxu0
    %s366 = scalar_lea.vmem [#allocation9], 128
    %v367 = vld [vmem:[%s366] sm:$0xff]
    %v368 = vld [vmem:[%s366 + $0x8] sm:$0xff]
    %v369 = vld [vmem:[%s366 + $0x10] sm:$0xff]
    %v370 = vld [vmem:[%s366 + $0x18] sm:$0xff]
    %v371 = vld [vmem:[%s366 + $0x20] sm:$0xff]
    %v372 = vld [vmem:[%s366 + $0x28] sm:$0xff]
    %v373 = vld [vmem:[%s366 + $0x30] sm:$0xff]
    %v374 = vld [vmem:[%s366 + $0x38] sm:$0xff]
    %v375 = vld [vmem:[%s366 + $0x40] sm:$0xff]
    %v376 = vld [vmem:[%s366 + $0x48] sm:$0xff]
    %v377 = vld [vmem:[%s366 + $0x50] sm:$0xff]
    %v378 = vld [vmem:[%s366 + $0x58] sm:$0xff]
    %v379 = vld [vmem:[%s366 + $0x60] sm:$0xff]
    %v380 = vld [vmem:[%s366 + $0x68] sm:$0xff]
    %v381 = vld [vmem:[%s366 + $0x70] sm:$0xff]
    %v382 = vld [vmem:[%s366 + $0x78] sm:$0xff]
    %s383 = scalar_lea.vmem %s5, 1
    %v384 = vld [vmem:[%s383] sm:$0x1]
    %v386 = vperm.slane %v384, 0
    %388 = vmatpush.msra.mxu0 %v382
    %389 = vmatpush.msra.mxu0 %v381
    %390 = vmatpush.msra.mxu0 %v380
    %391 = vmatpush.msra.mxu0 %v379
    %392 = vmatpush.msra.mxu0 %v378
    %393 = vmatpush.msra.mxu0 %v377
    %394 = vmatpush.msra.mxu0 %v376
    %395 = vmatpush.msra.mxu0 %v375
    %396 = vmatpush.msra.mxu0 %v374
    %397 = vmatpush.msra.mxu0 %v373
    %398 = vmatpush.msra.mxu0 %v372
    %399 = vmatpush.msra.mxu0 %v371
    %400 = vmatpush.msra.mxu0 %v370
    %401 = vmatpush.msra.mxu0 %v369
    %402 = vmatpush.msra.mxu0 %v368
    %403 = vmatpush.msra.mxu0 %v367
    %404 = vmatmul.f32.gmra.mxu0 %v361
    %v405 = vpop.f32.mrf.mxu0
    %v406 = vadd.f32 %v386, %v405
    %407 = vmatmul.f32.gmra.mxu0 %v364
    %v408 = vpop.f32.mrf.mxu0
    %v409 = vadd.f32 %v386, %v408
    %410 = vdwg.mxu0
    %v411 = vmax.f32 %v406, 0.0
    %v412 = vmax.f32 %v409, 0.0
    %s413 = scalar_lea.vmem [#allocation11], 128
    %v414 = vld [vmem:[%s413] sm:$0xff]
    %v415 = vld [vmem:[%s413 + $0x8] sm:$0xff]
    %v416 = vld [vmem:[%s413 + $0x10] sm:$0xff]
    %v417 = vld [vmem:[%s413 + $0x18] sm:$0xff]
    %v418 = vld [vmem:[%s413 + $0x20] sm:$0xff]
    %v419 = vld [vmem:[%s413 + $0x28] sm:$0xff]
    %v420 = vld [vmem:[%s413 + $0x30] sm:$0xff]
    %v421 = vld [vmem:[%s413 + $0x38] sm:$0xff]
    %v422 = vld [vmem:[%s413 + $0x40] sm:$0xff]
    %v423 = vld [vmem:[%s413 + $0x48] sm:$0xff]
    %v424 = vld [vmem:[%s413 + $0x50] sm:$0xff]
    %v425 = vld [vmem:[%s413 + $0x58] sm:$0xff]
    %v426 = vld [vmem:[%s413 + $0x60] sm:$0xff]
    %v427 = vld [vmem:[%s413 + $0x68] sm:$0xff]
    %v428 = vld [vmem:[%s413 + $0x70] sm:$0xff]
    %v429 = vld [vmem:[%s413 + $0x78] sm:$0xff]
    %s430 = scalar_lea.vmem [#allocation12], 1
    %v431 = vld [vmem:[%s430] sm:$0x1]
    %v433 = vperm.slane %v431, 0
    %435 = vmatpush.msra.mxu0 %v429
    %436 = vmatpush.msra.mxu0 %v428
    %437 = vmatpush.msra.mxu0 %v427
    %438 = vmatpush.msra.mxu0 %v426
    %439 = vmatpush.msra.mxu0 %v425
    %440 = vmatpush.msra.mxu0 %v424
    %441 = vmatpush.msra.mxu0 %v423
    %442 = vmatpush.msra.mxu0 %v422
    %443 = vmatpush.msra.mxu0 %v421
    %444 = vmatpush.msra.mxu0 %v420
    %445 = vmatpush.msra.mxu0 %v419
    %446 = vmatpush.msra.mxu0 %v418
    %447 = vmatpush.msra.mxu0 %v417
    %448 = vmatpush.msra.mxu0 %v416
    %449 = vmatpush.msra.mxu0 %v415
    %450 = vmatpush.msra.mxu0 %v414
    %451 = vmatmul.f32.gmra.mxu0 %v411
    %v452 = vpop.f32.mrf.mxu0
    %v453 = vadd.f32 %v433, %v452
    %454 = vmatmul.f32.gmra.mxu0 %v412
    %v455 = vpop.f32.mrf.mxu0
    %v456 = vadd.f32 %v433, %v455
    %457 = vdwg.mxu0
    %v458 = vmax.f32 %v453, 0.0
    %v459 = vmax.f32 %v456, 0.0
    %460 = vst [vmem:[#allocation2] sm:$0xff] %v458
    %461 = vst [vmem:[#allocation2 + $0x8] sm:$0xff] %v459
    %v462 = vld [vmem:[#allocation14] sm:$0x3]
    %v463 = vld [vmem:[#allocation2] sm:$0xff]
    %v464 = vld [vmem:[#allocation2 + $0x8] sm:$0xff]
    %v466 = vsel %vm172, %v462, 0
    %468 = vmatpush.msra.mxu0 0.0
    %469 = vmatpush.msra.mxu0 0.0
    %470 = vmatpush.msra.mxu0 0.0
    %471 = vmatpush.msra.mxu0 0.0
    %472 = vmatpush.msra.mxu0 0.0
    %473 = vmatpush.msra.mxu0 0.0
    %474 = vmatpush.msra.mxu0 0.0
    %475 = vmatpush.msra.mxu0 0.0
    %476 = vmatpush.msra.mxu0 0.0
    %477 = vmatpush.msra.mxu0 0.0
    %478 = vmatpush.msra.mxu0 0.0
    %479 = vmatpush.msra.mxu0 0.0
    %480 = vmatpush.msra.mxu0 0.0
    %481 = vmatpush.msra.mxu0 0.0
    %482 = vmatpush.msra.mxu0 %v464
    %483 = vmatpush.msra.mxu0 %v463
    %484 = vmatmul.f32.gmra.mxu0 %v466
    %v485 = vpop.f32.mrf.mxu0
    %v486 = vadd.f32 0.0, %v485
    %487 = vdwg.mxu0
    %v488 = vld [vmem:[%s9] sm:$0xff]
    %v489 = vld [vmem:[%s9 + $0x8] sm:$0xff]
    %v490 = vld [vmem:[%s9 + $0x10] sm:$0xff]
    %v491 = vld [vmem:[%s9 + $0x18] sm:$0xff]
    %v492 = vld [vmem:[%s9 + $0x20] sm:$0xff]
    %v493 = vld [vmem:[%s9 + $0x28] sm:$0xff]
    %v494 = vld [vmem:[%s9 + $0x30] sm:$0xff]
    %v495 = vld [vmem:[%s9 + $0x38] sm:$0xff]
    %v496 = vld [vmem:[%s9 + $0x40] sm:$0xff]
    %v497 = vld [vmem:[%s9 + $0x48] sm:$0xff]
    %v498 = vld [vmem:[%s9 + $0x50] sm:$0xff]
    %v499 = vld [vmem:[%s9 + $0x58] sm:$0xff]
    %v500 = vld [vmem:[%s9 + $0x60] sm:$0xff]
    %v501 = vld [vmem:[%s9 + $0x68] sm:$0xff]
    %v502 = vld [vmem:[%s9 + $0x70] sm:$0xff]
    %v503 = vld [vmem:[%s9 + $0x78] sm:$0xff]
    %v504 = vld [vmem:[#allocation15] sm:$0x1]
    %v506 = vperm.slane %v504, 0
    %508 = vmatpush.msra.mxu0 %v503
    %509 = vmatpush.msra.mxu0 %v502
    %510 = vmatpush.msra.mxu0 %v501
    %511 = vmatpush.msra.mxu0 %v500
    %512 = vmatpush.msra.mxu0 %v499
    %513 = vmatpush.msra.mxu0 %v498
    %514 = vmatpush.msra.mxu0 %v497
    %515 = vmatpush.msra.mxu0 %v496
    %516 = vmatpush.msra.mxu0 %v495
    %517 = vmatpush.msra.mxu0 %v494
    %518 = vmatpush.msra.mxu0 %v493
    %519 = vmatpush.msra.mxu0 %v492
    %520 = vmatpush.msra.mxu0 %v491
    %521 = vmatpush.msra.mxu0 %v490
    %522 = vmatpush.msra.mxu0 %v489
    %523 = vmatpush.msra.mxu0 %v488
    %524 = vmatmul.f32.gmra.mxu0 %v486
    %v525 = vpop.f32.mrf.mxu0
    %v526 = vadd.f32 %v506, %v525
    %527 = vdwg.mxu0
    %v528 = vmax.f32 %v526, 0.0
    %v529 = vld [vmem:[%s11] sm:$0xff]
    %v530 = vld [vmem:[%s11 + $0x8] sm:$0xff]
    %v531 = vld [vmem:[%s11 + $0x10] sm:$0xff]
    %v532 = vld [vmem:[%s11 + $0x18] sm:$0xff]
    %v533 = vld [vmem:[%s11 + $0x20] sm:$0xff]
    %v534 = vld [vmem:[%s11 + $0x28] sm:$0xff]
    %v535 = vld [vmem:[%s11 + $0x30] sm:$0xff]
    %v536 = vld [vmem:[%s11 + $0x38] sm:$0xff]
    %v537 = vld [vmem:[%s11 + $0x40] sm:$0xff]
    %v538 = vld [vmem:[%s11 + $0x48] sm:$0xff]
    %v539 = vld [vmem:[%s11 + $0x50] sm:$0xff]
    %v540 = vld [vmem:[%s11 + $0x58] sm:$0xff]
    %v541 = vld [vmem:[%s11 + $0x60] sm:$0xff]
    %v542 = vld [vmem:[%s11 + $0x68] sm:$0xff]
    %v543 = vld [vmem:[%s11 + $0x70] sm:$0xff]
    %v544 = vld [vmem:[%s11 + $0x78] sm:$0xff]
    %v545 = vld [vmem:[%s12] sm:$0x1]
    %v547 = vperm.slane %v545, 0
    %549 = vmatpush.msra.mxu0 %v544
    %550 = vmatpush.msra.mxu0 %v543
    %551 = vmatpush.msra.mxu0 %v542
    %552 = vmatpush.msra.mxu0 %v541
    %553 = vmatpush.msra.mxu0 %v540
    %554 = vmatpush.msra.mxu0 %v539
    %555 = vmatpush.msra.mxu0 %v538
    %556 = vmatpush.msra.mxu0 %v537
    %557 = vmatpush.msra.mxu0 %v536
    %558 = vmatpush.msra.mxu0 %v535
    %559 = vmatpush.msra.mxu0 %v534
    %560 = vmatpush.msra.mxu0 %v533
    %561 = vmatpush.msra.mxu0 %v532
    %562 = vmatpush.msra.mxu0 %v531
    %563 = vmatpush.msra.mxu0 %v530
    %564 = vmatpush.msra.mxu0 %v529
    %565 = vmatmul.f32.gmra.mxu0 %v528
    %v566 = vpop.f32.mrf.mxu0
    %v567 = vadd.f32 %v547, %v566
    %568 = vdwg.mxu0
    %vm569 = vcmask 58368
    %v570 = vsel %vm569, %v567, -inf
    %571 = vmax.xlane.f32.xlu0 %v570
    %v572 = vpop.xlane.xlu0 %571
    %v573 = vsub.f32 %v567, %v572
    %v574 = vmul.f32 %v573, 1.442695
    %v575 = vpow.pop %v574
    %v576 = vsel %vm569, %v575, 0.0
    %577 = vadd.xlane.f32.xlu0 %v576
    %v578 = vpop.xlane.xlu0 %577
    %v579 = vlog2.pop %v578
    %v580 = vmul.f32 %v579, 0.6931472
    %v581 = vsub.f32 %v573, %v580
    %582 = vst.msk [vmem:[#allocation17] sm:$0x3] %vm569, %v581
    // Predicated region
    $region86: #{tpu_custom_call.1} parent=1 // pred_check
      _
    $region87: #{tpu_custom_call.1} parent=1 // pred_check_branch
      %584 = sbr.rel (0) target = $region89
    $region88: #{tpu_custom_call.1} parent=1 // pred_region
      %586 = vsyncadd [#allocation5], 0
      %s588 = sshll.u32 [#allocation17], 4
      %s589 = int_to_ptr.vmem [resolvable:$true] %s588
      %s590 = sshll.u32 %s13, 4
      %s591 = int_to_ptr.hbm [resolvable:$true] %s590
      %593 = dma.vmem_to_hbm [thread:$0]  %s589, 32, %s591, [#allocation5]
    $region89: #{tpu_custom_call.1} parent=1 // pred_fallthru
      _
    // Predicated region
    $region90: #{tpu_custom_call.1} parent=1 // pred_check
      _
    $region91: #{tpu_custom_call.1} parent=1 // pred_check_branch
      %595 = sbr.rel (0) target = $region93
    $region92: #{tpu_custom_call.1} parent=1 // pred_region
      %597 = dma.done [#allocation5], 32
    $region93: #{tpu_custom_call.1} parent=1 // pred_fallthru
      _
    %598 = vsyncpa [#allocation4], 1
    %599 = vsyncpa [#allocation7], 1
    %600 = vsyncpa [#allocation10], 1
    %601 = vsyncpa [#allocation13], 1
    %602 = vsyncpa [#allocation16], 1
    %603 = vsyncpa [#allocation5], 1

</llo_original>
